<compile_context>
chip_gen: v5e
topology: v5e:2x2
jax: 0.10.0
libtpu: 0.0.40
codegen_flags: <defaults>
</compile_context>

<pallas_src>
import jax
import jax.numpy as jnp
from jax.experimental import pallas as pl
from jax.experimental.pallas import tpu as pltpu

_LANE = 128
_SUBLANE = 8
_MAX_BLOCK_ROWS = 2048   # (2048, 128) f32 block = 1 MiB per input buffer


def _make_l1_sum_kernel(block_rows, rows, num_blocks):
    """Builds the streaming |r - s| partial-sum kernel (all sizes static)."""
    ragged = (rows % block_rows) != 0
    tail_rows = rows - (num_blocks - 1) * block_rows  # valid rows in last block

    def kernel(real_ref, same_ref, out_ref):
        i = pl.program_id(0)

        # out_ref's block index is constant across the grid -> it stays
        # resident in VMEM and doubles as the accumulator.
        @pl.when(i == 0)
        def _():
            out_ref[...] = jnp.zeros_like(out_ref)

        r = real_ref[...].astype(jnp.float32)
        s = same_ref[...].astype(jnp.float32)
        elem = jnp.abs(r - s)

        if ragged:
            # Final block reads past the array: those rows hold unspecified
            # data, so mask them out (pure VALU compare+select, free under
            # HBM-bound slack).
            row_ids = jax.lax.broadcasted_iota(
                jnp.int32, (block_rows, _LANE), 0)
            limit = jnp.where(i == num_blocks - 1, tail_rows, block_rows)
            elem = jnp.where(row_ids < limit, elem, 0.0)

        # Fold the block's rows into the (8, 128) accumulator: tile-aligned
        # reshape + elementwise vreg adds (VALU only on the per-step path).
        out_ref[...] += elem.reshape(
            block_rows // _SUBLANE, _SUBLANE, _LANE).sum(axis=0)

    return kernel


def identity_loss(real_image, same_image, lambda_identity=5.0):
    """Pallas implementation of IdentityLoss.forward(real_image, same_image).

    Returns lambda_identity * mean(|real_image - same_image|).
    """
    assert real_image.shape == same_image.shape
    n = real_image.size

    # Lane-dense slab: rows x 128, rows rounded up to a sublane multiple.
    rows_min = -(-n // _LANE)                     # cdiv(n, 128)
    rows = -(-rows_min // _SUBLANE) * _SUBLANE    # round up to multiple of 8
    n_slab = rows * _LANE

    r_flat = real_image.reshape(-1)
    s_flat = same_image.reshape(-1)
    if n_slab != n:
        # Only taken when n is not a multiple of 1024 (never for typical NCHW
        # image tensors). Pads are zero in BOTH inputs -> contribute 0.
        # TODO(synk): could be removed entirely with a 1-D ragged-tail block.
        r_flat = jnp.pad(r_flat, (0, n_slab - n))
        s_flat = jnp.pad(s_flat, (0, n_slab - n))
    r2 = r_flat.reshape(rows, _LANE)
    s2 = s_flat.reshape(rows, _LANE)

    block_rows = min(_MAX_BLOCK_ROWS, rows)       # both multiples of 8
    num_blocks = -(-rows // block_rows)

    itemsize = real_image.dtype.itemsize
    blk = pl.BlockSpec((block_rows, _LANE), lambda i: (i, 0))

    partial = pl.pallas_call(
        _make_l1_sum_kernel(block_rows, rows, num_blocks),
        out_shape=jax.ShapeDtypeStruct((_SUBLANE, _LANE), jnp.float32),
        grid_spec=pltpu.PrefetchScalarGridSpec(
            num_scalar_prefetch=0,
            grid=(num_blocks,),
            in_specs=[blk, blk],
            out_specs=pl.BlockSpec((_SUBLANE, _LANE), lambda i: (0, 0)),
        ),
        compiler_params=pltpu.CompilerParams(
            dimension_semantics=("arbitrary",)),
        cost_estimate=pl.CostEstimate(
            flops=3 * n,
            transcendentals=0,
            bytes_accessed=2 * n * itemsize + _SUBLANE * _LANE * 4),
    )(r2, s2)

    # Final cross-lane reduce + mean + lambda scaling (tiny, done once).
    return jnp.sum(partial) * (lambda_identity / float(n))


if __name__ == "__main__":
    key = jax.random.PRNGKey(0)
    k1, k2 = jax.random.split(key)

    # NCHW, e.g. a small image batch: [2, 4, 16, 16]
    real_image = jax.random.normal(k1, (2, 4, 16, 16), jnp.float32)
    # "same_image" would be G(real) in CycleGAN; here a perturbed copy.
    same_image = real_image + 0.1 * jax.random.normal(
        k2, (2, 4, 16, 16), jnp.float32)

    lam = 5.0
    out = identity_loss(real_image, same_image, lambda_identity=lam)
    jax.block_until_ready(out)

    ref = lam * jnp.mean(jnp.abs(real_image - same_image))
    assert jnp.allclose(out, ref, atol=1e-5, rtol=1e-5), (out, ref)

    print("KERNEL_OK")
</pallas_src>

<mosaic_0001>
module attributes {stable_mosaic.version = 11 : i64} {
  func.func @kernel(%arg0: i32, %arg1: memref<16x128xf32, #tpu.memory_space<vmem>>, %arg2: memref<16x128xf32, #tpu.memory_space<vmem>>, %arg3: memref<8x128xf32, #tpu.memory_space<vmem>>) attributes {dimension_semantics = [#tpu.dimension_semantics<arbitrary>], iteration_bounds = array<i64: 1>, scalar_prefetch = 0 : i64, scratch_operands = 0 : i64, tpu.core_type = #tpu.core_type<tc>, window_params = [{transform_indices = @transform_0, window_bounds = array<i64: 16, 128>}, {transform_indices = @transform_1, window_bounds = array<i64: 16, 128>}, {pipeline_mode = #tpu.pipeline_mode<synchronous>, transform_indices = @transform_2, window_bounds = array<i64: 8, 128>}]} {
    %c0_i32 = arith.constant 0 : i32
    %0 = arith.cmpi eq, %arg0, %c0_i32 : i32
    %1 = arith.extui %0 : i1 to i32
    %c0_i32_0 = arith.constant 0 : i32
    %2 = arith.cmpi ne, %1, %c0_i32_0 : i32
    scf.if %2 {
      %cst_8 = arith.constant 0.000000e+00 : f32
      %12 = vector.broadcast %cst_8 : f32 to vector<8x128xf32>
      %c0_9 = arith.constant 0 : index
      %c0_10 = arith.constant 0 : index
      %13 = vector.load %arg3[%c0_9, %c0_10] : memref<8x128xf32, #tpu.memory_space<vmem>>, vector<8x128xf32>
      tpu.vector_store %arg3[%c0_9, %c0_10], %12 {strides = array<i32>} : memref<8x128xf32, #tpu.memory_space<vmem>>, vector<8x128xf32>,
    } else {
    }
    %c0 = arith.constant 0 : index
    %c0_1 = arith.constant 0 : index
    %3 = vector.load %arg1[%c0, %c0_1] : memref<16x128xf32, #tpu.memory_space<vmem>>, vector<16x128xf32>
    %c0_2 = arith.constant 0 : index
    %c0_3 = arith.constant 0 : index
    %4 = vector.load %arg2[%c0_2, %c0_3] : memref<16x128xf32, #tpu.memory_space<vmem>>, vector<16x128xf32>
    %5 = arith.subf %3, %4 : vector<16x128xf32>
    %6 = math.absf %5 : vector<16x128xf32>
    %c0_4 = arith.constant 0 : index
    %c0_5 = arith.constant 0 : index
    %7 = vector.load %arg3[%c0_4, %c0_5] : memref<8x128xf32, #tpu.memory_space<vmem>>, vector<8x128xf32>
    %8 = vector.shape_cast %6 : vector<16x128xf32> to vector<2x8x128xf32>
    %cst = arith.constant dense<0.000000e+00> : vector<8x128xf32>
    %9 = vector.multi_reduction <add>, %8, %cst [0] : vector<2x8x128xf32> to vector<8x128xf32>
    %10 = arith.addf %7, %9 : vector<8x128xf32>
    %c0_6 = arith.constant 0 : index
    %c0_7 = arith.constant 0 : index
    %11 = vector.load %arg3[%c0_6, %c0_7] : memref<8x128xf32, #tpu.memory_space<vmem>>, vector<8x128xf32>
    tpu.vector_store %arg3[%c0_6, %c0_7], %10 {strides = array<i32>} : memref<8x128xf32, #tpu.memory_space<vmem>>, vector<8x128xf32>,
    return
  }
  func.func @transform_0(%arg0: i32) -> (i32, i32) {
    %c0_i32 = arith.constant 0 : i32
    %c0_i32_0 = arith.constant 0 : i32
    return %arg0, %c0_i32 : i32, i32
  }
  func.func @transform_1(%arg0: i32) -> (i32, i32) {
    %c0_i32 = arith.constant 0 : i32
    %c0_i32_0 = arith.constant 0 : i32
    return %arg0, %c0_i32 : i32, i32
  }
  func.func @transform_2(%arg0: i32) -> (i32, i32) {
    %c0_i32 = arith.constant 0 : i32
    %c0_i32_0 = arith.constant 0 : i32
    %c0_i32_1 = arith.constant 0 : i32
    return %c0_i32, %c0_i32_0 : i32, i32
  }
}

</mosaic_0001>

<llo_original>
// kernel: tpu_custom_call.1
$region0: #{tpu_custom_call.1}
  #allocation0 [shape = 'u32[]', space=smem, size = 0x4, offset = 0x4, fixed_abs, tag = 'smem constant byte address 0x4 - core index']
  #allocation1 [shape = 'u32[72,128]{1,0:T(1,128)}', space=vmem, size = 0x9000, scoped, tag = 'internal scratch']
  %s0 = inlined_call_operand.hbm [shape: f32[16,128], index: 0, kind: input, shape index: {}]
  %s1 = inlined_call_operand.hbm [shape: f32[16,128], index: 1, kind: input, shape index: {}]
  %s2 = inlined_call_operand.hbm [shape: f32[8,128], index: 2, kind: output, shape index: {}]
  %s3 = sld [smem:[#allocation0]]
  $region30: #{tpu_custom_call.1} parent=0
    _
  %s5 = ssub.s32 1, %s3
  %s6 = scalar_select 0, %s5, %s3
  $region1: #{tpu_custom_call.1} parent=0
    #allocation2 [shape = 'u8[8192]{0}', space=vmem, size = 0x2000, scoped, tag = 'input window, operand 0, single buffered']
    #allocation3 [shape = 's32[1]{0}', space=sflag, size = 0x4, scoped, tag = 'scoped memory for tpu_custom_call.1']
    #allocation4 [shape = 's32[1]{0}', space=sflag, size = 0x4, scoped, tag = 'scoped memory for tpu_custom_call.1']
    #allocation5 [shape = 'u8[8192]{0}', space=vmem, size = 0x2000, scoped, tag = 'input window, operand 1, single buffered']
    #allocation6 [shape = 's32[1]{0}', space=sflag, size = 0x4, scoped, tag = 'scoped memory for tpu_custom_call.1']
    #allocation7 [shape = 'u8[4096]{0}', space=vmem, size = 0x1000, scoped, tag = 'output window, operand 0, single buffered']
    %7 = vsyncpa [#allocation3], 0
    %8 = vsyncpa [#allocation6], 0
    %9 = vsyncpa [#allocation4], 0
    // Predicated region
    $region2: #{tpu_custom_call.1} parent=1 // pred_check
      _
    $region3: #{tpu_custom_call.1} parent=1 // pred_check_branch
      %11 = sbr.rel (0) target = $region5
    $region4: #{tpu_custom_call.1} parent=1 // pred_region
      %13 = vsyncadd [#allocation3], 0
      %s14 = sshll.u32 %s0, 4
      %s15 = int_to_ptr.hbm [resolvable:$true] %s14
      %s16 = sshll.u32 [#allocation2], 4
      %s17 = int_to_ptr.vmem [resolvable:$true] %s16
      %22 = dma.hbm_to_vmem [thread:$0]  %s15, 256, %s17, [#allocation3], 128, 128, 8
    $region5: #{tpu_custom_call.1} parent=1 // pred_fallthru
      _
    // Predicated region
    $region6: #{tpu_custom_call.1} parent=1 // pred_check
      _
    $region7: #{tpu_custom_call.1} parent=1 // pred_check_branch
      %24 = sbr.rel (0) target = $region9
    $region8: #{tpu_custom_call.1} parent=1 // pred_region
      %26 = vsyncadd [#allocation6], 0
      %s27 = sshll.u32 %s1, 4
      %s28 = int_to_ptr.hbm [resolvable:$true] %s27
      %s29 = sshll.u32 [#allocation5], 4
      %s30 = int_to_ptr.vmem [resolvable:$true] %s29
      %35 = dma.hbm_to_vmem [thread:$0]  %s28, 256, %s30, [#allocation6], 128, 128, 8
    $region9: #{tpu_custom_call.1} parent=1 // pred_fallthru
      _
    // Predicated region
    $region10: #{tpu_custom_call.1} parent=1 // pred_check
      _
    $region11: #{tpu_custom_call.1} parent=1 // pred_check_branch
      %37 = sbr.rel (0) target = $region13
    $region12: #{tpu_custom_call.1} parent=1 // pred_region
      %39 = dma.done [#allocation3], 256
    $region13: #{tpu_custom_call.1} parent=1 // pred_fallthru
      _
    // Predicated region
    $region14: #{tpu_custom_call.1} parent=1 // pred_check
      _
    $region15: #{tpu_custom_call.1} parent=1 // pred_check_branch
      %41 = sbr.rel (0) target = $region17
    $region16: #{tpu_custom_call.1} parent=1 // pred_region
      %43 = dma.done [#allocation6], 256
    $region17: #{tpu_custom_call.1} parent=1 // pred_fallthru
      _
    %p44 = scmp.eq.s32.totalorder 0, 0
    // Predicated region
    $region18: #{tpu_custom_call.1} parent=1 // pred_check
      %p45 = pneg %p44
    $region19: #{tpu_custom_call.1} parent=1 // pred_check_branch
      %47 = sbr.rel (%p45) target = $region21
    $region20: #{tpu_custom_call.1} parent=1 // pred_region
      %48 = vst [vmem:[#allocation7] sm:$0xff] 0.0
    $region21: #{tpu_custom_call.1} parent=1 // pred_fallthru
      _
    %v49 = vld [vmem:[#allocation2] sm:$0xff]
    %v50 = vld [vmem:[#allocation2 + $0x8] sm:$0xff]
    %v51 = vld [vmem:[#allocation5] sm:$0xff]
    %v52 = vld [vmem:[#allocation5 + $0x8] sm:$0xff]
    %v53 = vsub.f32 %v49, %v51
    %v54 = vsub.f32 %v50, %v52
    %v55 = vand.u32 2147483647, %v53
    %v56 = vand.u32 2147483647, %v54
    %v57 = vld [vmem:[#allocation7] sm:$0xff]
    %v58 = vadd.f32 %v55, %v56
    %v59 = vadd.f32 %v57, %v58
    %60 = vst [vmem:[#allocation7] sm:$0xff] %v59
    // Predicated region
    $region22: #{tpu_custom_call.1} parent=1 // pred_check
      _
    $region23: #{tpu_custom_call.1} parent=1 // pred_check_branch
      %62 = sbr.rel (0) target = $region25
    $region24: #{tpu_custom_call.1} parent=1 // pred_region
      %64 = vsyncadd [#allocation4], 0
      %s66 = sshll.u32 [#allocation7], 4
      %s67 = int_to_ptr.vmem [resolvable:$true] %s66
      %s68 = sshll.u32 %s2, 4
      %s69 = int_to_ptr.hbm [resolvable:$true] %s68
      %71 = dma.vmem_to_hbm [thread:$0]  %s67, 128, %s69, [#allocation4]
    $region25: #{tpu_custom_call.1} parent=1 // pred_fallthru
      _
    // Predicated region
    $region26: #{tpu_custom_call.1} parent=1 // pred_check
      _
    $region27: #{tpu_custom_call.1} parent=1 // pred_check_branch
      %73 = sbr.rel (0) target = $region29
    $region28: #{tpu_custom_call.1} parent=1 // pred_region
      %75 = dma.done [#allocation4], 128
    $region29: #{tpu_custom_call.1} parent=1 // pred_fallthru
      _
    %76 = vsyncpa [#allocation3], 1
    %77 = vsyncpa [#allocation6], 1
    %78 = vsyncpa [#allocation4], 1

</llo_original>
